<compile_context>
chip_gen: v7x
topology: tpu7x:2x2x1
jax: 0.10.0
libtpu: 0.0.40
codegen_flags: <defaults>
</compile_context>

<pallas_src>
import functools

import jax
import jax.numpy as jnp
from jax.experimental import pallas as pl
from jax.experimental.pallas import tpu as pltpu


def _round_up(n, m):
    return ((n + m - 1) // m) * m


def _cdiv(a, b):
    return (a + b - 1) // b


def _tfidf_nn_kernel(x_ref, w1_ref, b1_ref, w2_ref, b2_ref, o_ref, acc_ref,
                     *, tk, w1_resident):
    """Grid = (batch_tiles, vocab_tiles); vocab (reduction) axis last, 'arbitrary'."""
    k = pl.program_id(1)

    @pl.when(k == 0)
    def _init():
        acc_ref[...] = jnp.zeros_like(acc_ref)

    if w1_resident:
        # Full W1 [V_pad, H_pad] lives in VMEM for the whole grid (constant block
        # index => DMA'd once); take this step's vocab slice in-VMEM.
        start = pl.multiple_of(k * tk, 128)
        w1_tile = w1_ref[pl.ds(start, tk), :]
    else:
        # Streaming: this step's [tk, H_pad] tile was DMA'd by the BlockSpec.
        w1_tile = w1_ref[...]

    # x tile [bm, tk] @ W1 tile [tk, H_pad] -> f32 accumulate on the MXU.
    acc_ref[...] += jnp.dot(x_ref[...], w1_tile,
                            preferred_element_type=jnp.float32)

    @pl.when(k == pl.num_programs(1) - 1)
    def _finalize():
        h1 = jnp.maximum(acc_ref[...] + b1_ref[...], 0.0)        # bias + ReLU (f32)
        out = jnp.dot(h1.astype(w2_ref.dtype), w2_ref[...],
                      preferred_element_type=jnp.float32)
        o_ref[...] = (out + b2_ref[...]).astype(o_ref.dtype)     # lane-dense [bm,128] store


def prepare_tfidf_nn_params(w1, b1, w2, b2, *, tk=2048, compute_dtype=jnp.bfloat16):
    """One-time weight preparation (model-load time, NOT per forward call).

    w1: [H, V] (PyTorch Linear layout), b1: [H], w2: [O, H], b2: [O].
      * W1 is transposed to [V, H] once (plain MXU matmul inside the kernel).
      * V/H/O are zero-padded to aligned sizes; tk is re-balanced so V padding
        waste is minimal.
      * Streamed weights are cast to `compute_dtype` (bf16 default); biases f32.
    """
    H, V = w1.shape
    O = w2.shape[0]

    H_pad = _round_up(H, 128)
    O_pad = 128                                   # lane-dense output block
    V_128 = _round_up(V, 128)
    tk = _round_up(min(tk, V_128), 128)
    n_k = _cdiv(V_128, tk)
    tk = _round_up(_cdiv(V_128, n_k), 128)        # re-balance: minimal padding
    V_pad = tk * n_k

    w1_p = jnp.pad(w1.T.astype(compute_dtype), ((0, V_pad - V), (0, H_pad - H)))
    b1_p = jnp.pad(b1.astype(jnp.float32), (0, H_pad - H)).reshape(1, H_pad)
    w2_p = jnp.pad(w2.T.astype(compute_dtype), ((0, H_pad - H), (0, O_pad - O)))
    b2_p = jnp.pad(b2.astype(jnp.float32), (0, O_pad - O)).reshape(1, O_pad)

    return dict(w1=w1_p, b1=b1_p, w2=w2_p, b2=b2_p,
                V=V, H=H, O=O, V_pad=V_pad, H_pad=H_pad, O_pad=O_pad, tk=tk,
                compute_dtype=compute_dtype)


def tfidf_nn_forward(x, params, *, bm=None, w1_resident=None, vmem_limit_bytes=None):
    """x: [B, V] f32 TF-IDF features; params from prepare_tfidf_nn_params.
    Returns logits [B, O] (f32)."""
    B, V = x.shape
    assert V == params["V"], "vocab size mismatch with prepared params"
    V_pad, H_pad, O_pad, tk = params["V_pad"], params["H_pad"], params["O_pad"], params["tk"]
    O = params["O"]
    dtype = params["compute_dtype"]
    dsize = jnp.dtype(dtype).itemsize

    # --- batch tile: big enough to amortize W1 streaming, but keep >=2 programs
    #     on the 'parallel' axis for small batches (v7x has 2 TensorCores).
    if bm is None:
        bm = 512 if B >= 2048 else 256
        if 8 < B <= bm:
            bm = _cdiv(B, 2)
    bm = max(8, _round_up(min(bm, _round_up(B, 8)), 8))
    B_pad = _round_up(B, bm)
    n_bt = B_pad // bm
    n_k = V_pad // tk

    # --- W1 residency: constant block index => DMA'd once for the whole grid.
    #     Threshold is conservative so it is safe even on v7x (64 MiB physical
    #     VMEM, 32 MiB scoped default); bigger vocabularies stay K-tiled.
    w1_bytes = V_pad * H_pad * dsize
    if w1_resident is None:
        w1_resident = w1_bytes <= (8 << 20)

    # --- per-call input prep (unavoidable for arbitrary B/V): pad + cast x.
    x_p = jnp.pad(x.astype(dtype), ((0, B_pad - B), (0, V_pad - V)))

    if w1_resident:
        w1_spec = pl.BlockSpec((V_pad, H_pad), lambda i, k: (0, 0))
        w1_stream_bytes = w1_bytes                      # fetched once
    else:
        w1_spec = pl.BlockSpec((tk, H_pad), lambda i, k: (k, 0))
        w1_stream_bytes = w1_bytes * n_bt               # re-streamed per batch tile

    # --- explicit VMEM budget (double-buffered streamed tiles + weights + acc).
    est = (2 * bm * tk * dsize                                  # x tiles
           + (2 * w1_bytes if w1_resident else 2 * tk * H_pad * dsize)
           + bm * H_pad * 4                                     # f32 accumulator
           + 2 * bm * O_pad * 4                                 # output blocks
           + H_pad * O_pad * dsize + 2 * (H_pad + O_pad) * 4)   # W2 + biases
    if vmem_limit_bytes is None:
        vmem_limit_bytes = min(max(2 * est, 32 << 20), 64 << 20)

    cost = pl.CostEstimate(
        flops=2 * B_pad * V_pad * H_pad + 2 * B_pad * H_pad * O_pad,
        transcendentals=0,
        bytes_accessed=B_pad * V_pad * dsize + w1_stream_bytes + B_pad * O_pad * 4)

    kernel = functools.partial(_tfidf_nn_kernel, tk=tk, w1_resident=w1_resident)

    out_padded = pl.pallas_call(
        kernel,
        out_shape=jax.ShapeDtypeStruct((B_pad, O_pad), jnp.float32),
        grid_spec=pltpu.PrefetchScalarGridSpec(
            num_scalar_prefetch=0,
            grid=(n_bt, n_k),
            in_specs=[
                pl.BlockSpec((bm, tk), lambda i, k: (i, k)),        # x tile
                w1_spec,                                            # W1 ([V,H] layout)
                pl.BlockSpec((1, H_pad), lambda i, k: (0, 0)),      # b1
                pl.BlockSpec((H_pad, O_pad), lambda i, k: (0, 0)),  # W2 (lane-dense)
                pl.BlockSpec((1, O_pad), lambda i, k: (0, 0)),      # b2
            ],
            out_specs=pl.BlockSpec((bm, O_pad), lambda i, k: (i, 0)),
            scratch_shapes=[pltpu.VMEM((bm, H_pad), jnp.float32)],  # f32 accumulator
        ),
        compiler_params=pltpu.CompilerParams(
            dimension_semantics=("parallel", "arbitrary"),
            vmem_limit_bytes=int(vmem_limit_bytes)),
        cost_estimate=cost,
    )(x_p, params["w1"], params["b1"], params["w2"], params["b2"])

    return out_padded[:B, :O]


def reference_forward(x, w1, b1, w2, b2):
    h1 = jnp.maximum(x @ w1.T + b1, 0.0)
    return h1 @ w2.T + b2


if __name__ == "__main__":
    # Shapes consistent with the module (hidden_size=100, 2 classes); B and V
    # deliberately non-aligned to exercise padding / multi-tile paths.
    B, V, H, O = 37, 300, 100, 2

    key = jax.random.PRNGKey(0)
    kx, kw1, kb1, kw2, kb2 = jax.random.split(key, 5)

    # Synthetic non-negative sparse-ish TF-IDF features.
    x = jax.random.uniform(kx, (B, V), dtype=jnp.float32)
    x = jnp.where(x > 0.8, x, 0.0)

    # Parameters in PyTorch Linear layout ([out, in]).
    w1 = jax.random.normal(kw1, (H, V), dtype=jnp.float32) * 0.05
    b1 = jax.random.normal(kb1, (H,), dtype=jnp.float32) * 0.05
    w2 = jax.random.normal(kw2, (O, H), dtype=jnp.float32) * 0.05
    b2 = jax.random.normal(kb2, (O,), dtype=jnp.float32) * 0.05

    ref = reference_forward(x, w1, b1, w2, b2)

    # 1) f32 weights, K-tiled (streaming) W1. Small bm/tk here only so the demo
    #    exercises multiple batch tiles and multiple reduction steps.
    p_f32 = prepare_tfidf_nn_params(w1, b1, w2, b2, tk=128,
                                    compute_dtype=jnp.float32)
    out_f32 = jax.block_until_ready(
        tfidf_nn_forward(x, p_f32, bm=16, w1_resident=False))
    assert out_f32.shape == (B, O)
    assert jnp.allclose(out_f32, ref, atol=1e-4, rtol=1e-4)

    # 2) Production defaults: bf16 streamed operands, auto bm (>=2 batch tiles),
    #    auto-resident W1 (DMA'd once for the whole grid), f32 accumulation.
    p_bf16 = prepare_tfidf_nn_params(w1, b1, w2, b2)
    out_bf16 = jax.block_until_ready(tfidf_nn_forward(x, p_bf16))
    assert out_bf16.shape == (B, O)
    assert jnp.allclose(out_bf16, ref, atol=3e-2, rtol=3e-2)

    print("KERNEL_OK")
</pallas_src>

<mosaic_0001>
module attributes {stable_mosaic.version = 11 : i64} {
  func.func @_tfidf_nn_kernel(%arg0: i32, %arg1: i32, %arg2: memref<16x128xf32, #tpu.memory_space<vmem>>, %arg3: memref<128x128xf32, #tpu.memory_space<vmem>>, %arg4: memref<1x128xf32, #tpu.memory_space<vmem>>, %arg5: memref<128x128xf32, #tpu.memory_space<vmem>>, %arg6: memref<1x128xf32, #tpu.memory_space<vmem>>, %arg7: memref<16x128xf32, #tpu.memory_space<vmem>>, %arg8: memref<16x128xf32, #tpu.memory_space<vmem>>) attributes {dimension_semantics = [#tpu.dimension_semantics<parallel>, #tpu.dimension_semantics<arbitrary>], iteration_bounds = array<i64: 3, 3>, scalar_prefetch = 0 : i64, scratch_operands = 1 : i64, tpu.core_type = #tpu.core_type<tc>, window_params = [{transform_indices = @transform_0, window_bounds = array<i64: 16, 128>}, {transform_indices = @transform_1, window_bounds = array<i64: 128, 128>}, {pipeline_mode = #tpu.pipeline_mode<synchronous>, transform_indices = @transform_2, window_bounds = array<i64: 1, 128>}, {pipeline_mode = #tpu.pipeline_mode<synchronous>, transform_indices = @transform_3, window_bounds = array<i64: 128, 128>}, {pipeline_mode = #tpu.pipeline_mode<synchronous>, transform_indices = @transform_4, window_bounds = array<i64: 1, 128>}, {transform_indices = @transform_5, window_bounds = array<i64: 16, 128>}]} {
    %c0_i32 = arith.constant 0 : i32
    %0 = arith.cmpi eq, %arg1, %c0_i32 : i32
    %1 = arith.extui %0 : i1 to i32
    %c0_i32_0 = arith.constant 0 : i32
    %2 = arith.cmpi ne, %1, %c0_i32_0 : i32
    scf.if %2 {
      %cst_9 = arith.constant 0.000000e+00 : f32
      %12 = vector.broadcast %cst_9 : f32 to vector<16x128xf32>
      %c0_10 = arith.constant 0 : index
      %c0_11 = arith.constant 0 : index
      %13 = vector.load %arg8[%c0_10, %c0_11] : memref<16x128xf32, #tpu.memory_space<vmem>>, vector<16x128xf32>
      tpu.vector_store %arg8[%c0_10, %c0_11], %12 {strides = array<i32>} : memref<16x128xf32, #tpu.memory_space<vmem>>, vector<16x128xf32>,
    } else {
    }
    %c0 = arith.constant 0 : index
    %c0_1 = arith.constant 0 : index
    %3 = vector.load %arg3[%c0, %c0_1] : memref<128x128xf32, #tpu.memory_space<vmem>>, vector<128x128xf32>
    %c0_2 = arith.constant 0 : index
    %c0_3 = arith.constant 0 : index
    %4 = vector.load %arg8[%c0_2, %c0_3] : memref<16x128xf32, #tpu.memory_space<vmem>>, vector<16x128xf32>
    %c0_4 = arith.constant 0 : index
    %c0_5 = arith.constant 0 : index
    %5 = vector.load %arg2[%c0_4, %c0_5] : memref<16x128xf32, #tpu.memory_space<vmem>>, vector<16x128xf32>
    %cst = arith.constant dense<0.000000e+00> : vector<16x128xf32>
    %6 = tpu.matmul %5, %3, %cst {dimension_numbers = #tpu.dot_dimension_numbers<[1], [0], [0], [1], [0, 0, 1, 1], [], []>} : vector<16x128xf32>, vector<128x128xf32>, vector<16x128xf32> -> vector<16x128xf32>
    %7 = arith.addf %4, %6 : vector<16x128xf32>
    %c0_6 = arith.constant 0 : index
    %c0_7 = arith.constant 0 : index
    %8 = vector.load %arg8[%c0_6, %c0_7] : memref<16x128xf32, #tpu.memory_space<vmem>>, vector<16x128xf32>
    tpu.vector_store %arg8[%c0_6, %c0_7], %7 {strides = array<i32>} : memref<16x128xf32, #tpu.memory_space<vmem>>, vector<16x128xf32>,
    %c2_i32 = arith.constant 2 : i32
    %9 = arith.cmpi eq, %arg1, %c2_i32 : i32
    %10 = arith.extui %9 : i1 to i32
    %c0_i32_8 = arith.constant 0 : i32
    %11 = arith.cmpi ne, %10, %c0_i32_8 : i32
    scf.if %11 {
      %c0_9 = arith.constant 0 : index
      %c0_10 = arith.constant 0 : index
      %12 = vector.load %arg8[%c0_9, %c0_10] : memref<16x128xf32, #tpu.memory_space<vmem>>, vector<16x128xf32>
      %c0_11 = arith.constant 0 : index
      %c0_12 = arith.constant 0 : index
      %13 = vector.load %arg4[%c0_11, %c0_12] : memref<1x128xf32, #tpu.memory_space<vmem>>, vector<1x128xf32>
      %14 = vector.broadcast %13 : vector<1x128xf32> to vector<16x128xf32>
      %15 = arith.addf %12, %14 : vector<16x128xf32>
      %cst_13 = arith.constant 0.000000e+00 : f32
      %16 = vector.broadcast %cst_13 : f32 to vector<16x128xf32>
      %17 = arith.maximumf %15, %16 : vector<16x128xf32>
      %c0_14 = arith.constant 0 : index
      %c0_15 = arith.constant 0 : index
      %18 = vector.load %arg5[%c0_14, %c0_15] : memref<128x128xf32, #tpu.memory_space<vmem>>, vector<128x128xf32>
      %cst_16 = arith.constant dense<0.000000e+00> : vector<16x128xf32>
      %19 = tpu.matmul %17, %18, %cst_16 {dimension_numbers = #tpu.dot_dimension_numbers<[1], [0], [0], [1], [0, 0, 1, 1], [], []>} : vector<16x128xf32>, vector<128x128xf32>, vector<16x128xf32> -> vector<16x128xf32>
      %c0_17 = arith.constant 0 : index
      %c0_18 = arith.constant 0 : index
      %20 = vector.load %arg6[%c0_17, %c0_18] : memref<1x128xf32, #tpu.memory_space<vmem>>, vector<1x128xf32>
      %21 = vector.broadcast %20 : vector<1x128xf32> to vector<16x128xf32>
      %22 = arith.addf %19, %21 : vector<16x128xf32>
      %c0_19 = arith.constant 0 : index
      %c0_20 = arith.constant 0 : index
      %23 = vector.load %arg7[%c0_19, %c0_20] : memref<16x128xf32, #tpu.memory_space<vmem>>, vector<16x128xf32>
      tpu.vector_store %arg7[%c0_19, %c0_20], %22 {strides = array<i32>} : memref<16x128xf32, #tpu.memory_space<vmem>>, vector<16x128xf32>,
    } else {
    }
    return
  }
  func.func @transform_0(%arg0: i32, %arg1: i32) -> (i32, i32) {
    %c0_i32 = arith.constant 0 : i32
    return %arg0, %arg1 : i32, i32
  }
  func.func @transform_1(%arg0: i32, %arg1: i32) -> (i32, i32) {
    %c0_i32 = arith.constant 0 : i32
    %c0_i32_0 = arith.constant 0 : i32
    return %arg1, %c0_i32 : i32, i32
  }
  func.func @transform_2(%arg0: i32, %arg1: i32) -> (i32, i32) {
    %c0_i32 = arith.constant 0 : i32
    %c0_i32_0 = arith.constant 0 : i32
    %c0_i32_1 = arith.constant 0 : i32
    return %c0_i32, %c0_i32_0 : i32, i32
  }
  func.func @transform_3(%arg0: i32, %arg1: i32) -> (i32, i32) {
    %c0_i32 = arith.constant 0 : i32
    %c0_i32_0 = arith.constant 0 : i32
    %c0_i32_1 = arith.constant 0 : i32
    return %c0_i32, %c0_i32_0 : i32, i32
  }
  func.func @transform_4(%arg0: i32, %arg1: i32) -> (i32, i32) {
    %c0_i32 = arith.constant 0 : i32
    %c0_i32_0 = arith.constant 0 : i32
    %c0_i32_1 = arith.constant 0 : i32
    return %c0_i32, %c0_i32_0 : i32, i32
  }
  func.func @transform_5(%arg0: i32, %arg1: i32) -> (i32, i32) {
    %c0_i32 = arith.constant 0 : i32
    %c0_i32_0 = arith.constant 0 : i32
    return %arg0, %c0_i32 : i32, i32
  }
}

</mosaic_0001>

<llo_original>
// kernel: tpu_custom_call.1
$region0: #{tpu_custom_call.1}
  #allocation0 [shape = 'u32[]', space=smem, size = 0x4, offset = 0x4, fixed_abs, tag = 'smem constant byte address 0x4 - core index']
  #allocation1 [shape = 'u32[144,128]{1,0:T(1,128)}', space=vmem, size = 0x12000, scoped, tag = 'internal scratch']
  #allocation2 [shape = 'f32[16,128]{1,0:T(8,128)}', space=vmem, size = 0x2000, scoped, tag = 'scratch operand']
  %s0 = inlined_call_operand.hbm [shape: f32[48,384], index: 0, kind: input, shape index: {}]
  %s1 = inlined_call_operand.hbm [shape: f32[384,128], index: 1, kind: input, shape index: {}]
  %s2 = inlined_call_operand.vmem [shape: f32[1,128], index: 2, kind: input, shape index: {}]
  %s3 = inlined_call_operand.hbm [shape: f32[128,128], index: 3, kind: input, shape index: {}]
  %s4 = inlined_call_operand.vmem [shape: f32[1,128], index: 4, kind: input, shape index: {}]
  %s5 = inlined_call_operand.hbm [shape: f32[48,128], index: 5, kind: output, shape index: {}]
  %s6 = sld [smem:[#allocation0]]
  $region73: #{tpu_custom_call.1} parent=0
    _
  %s8 = ssub.s32 1, %s6
  %s9 = scalar_select 0, %s8, %s6
  $region1: #{tpu_custom_call.1} parent=0
    #allocation3 [shape = 'u8[16384]{0}', space=vmem, size = 0x4000, scoped, tag = 'input window, operand 0']
    #allocation4 [shape = 's32[2]{0}', space=sflag, size = 0x8, scoped, tag = 'scoped memory for tpu_custom_call.1']
    #allocation5 [shape = 's32[2]{0}', space=sflag, size = 0x8, scoped, tag = 'scoped memory for tpu_custom_call.1']
    #allocation6 [shape = 'u8[131072]{0}', space=vmem, size = 0x20000, scoped, tag = 'input window, operand 1']
    #allocation7 [shape = 's32[2]{0}', space=sflag, size = 0x8, scoped, tag = 'scoped memory for tpu_custom_call.1']
    #allocation8 [shape = 'u8[65536]{0}', space=vmem, size = 0x10000, scoped, tag = 'input window, operand 3, single buffered']
    #allocation9 [shape = 'u8[16384]{0}', space=vmem, size = 0x4000, scoped, tag = 'output window, operand 0']
    %10 = vsyncpa [#allocation4], 0
    %s11 = scalar_lea.sflag [#allocation4], 1
    %12 = vsyncpa %s11, 0
    %13 = vsyncpa [#allocation7], 0
    %s14 = scalar_lea.sflag [#allocation7], 1
    %15 = vsyncpa %s14, 0
    %16 = vsyncpa [#allocation5], 0
    %s17 = scalar_lea.sflag [#allocation5], 1
    %18 = vsyncpa %s17, 0
    loop: start=0, step=1, limit=11
    $region2: #{tpu_custom_call.1} parent=1 // loop_pre_header
      _
    $region3: #{tpu_custom_call.1} parent=1 // loop_header
      %s20 = sphi 0, %s24
      %p21 = scmp.ge.s32.totalorder %s20, 11
      %s27 = sphi 0, %s39
      %s28 = sphi 0, %s35
      %s29 = sphi 0, %s27
      %s30 = sphi 0, %s28
      %s31 = sphi 0, %s29
      %s32 = sphi 0, %s30
      %s44 = sphi 0, %s46
      %s47 = sphi 0, %s44
      %s48 = sphi 0, %s47
      %s64 = sphi 0, %s48
      %s70 = sphi 0, %s72
      %s73 = sphi 0, %s70
      %s74 = sphi 0, %s73
      %s90 = sphi 0, %s74
      %s94 = sphi 0, %s94
      %s96 = sphi 0, %s94
      %s97 = sphi 0, %s96
      %s111 = sphi 0, %s97
      %s115 = sphi 0, %s115
      %s117 = sphi 0, %s115
      %s118 = sphi 0, %s117
      %s132 = sphi 0, %s118
      %s136 = sphi 0, %s136
      %s138 = sphi 0, %s136
      %s139 = sphi 0, %s138
      %s153 = sphi 0, %s139
      %s159 = sphi 0, %s161
      %s162 = sphi 0, %s159
      %s163 = sphi 0, %s162
      %s179 = sphi 0, %s163
    $region4: #{tpu_custom_call.1} parent=1 // loop_header_branch
      %23 = sbr.rel (%p21) target = $region8
    $region5: #{tpu_custom_call.1} parent=1 // loop_body
      %s25 = ssub.s32 %s20, 1
      %s26 = ssub.s32 %s20, 2
      %s33 = sadd.s32 1, %s28
      %p34 = scmp.ge.s32.totalorder %s33, 3
      %s35 = scalar_select %p34, 0, %s33
      %s36 = sadd.s32 1, %s27
      %s37 = scalar_select %p34, %s36, %s27
      %p38 = scmp.ge.s32.totalorder %s37, 3
      %s39 = scalar_select %p38, 0, %s37
      %s40 = ssub.s32 %s27, %s39
      %s41 = ssub.s32 %s28, %s35
      %s42 = sor.u32 %s40, %s41
      %p43 = scmp.eq.s32.totalorder %s42, 0
      %s45 = sadd.s32 %s44, 1
      %s46 = scalar_select %p43, %s44, %s45
      %p49 = pneg %p43
      %p50 = scmp.eq.s32.totalorder %s20, 8
      %p51 = por %p49, %p50
      %p52 = scmp.ne.s32.totalorder %s44, %s47
      %p53 = scmp.eq.s32.totalorder %s20, 0
      %p54 = por %p52, %p53
      %p55 = scmp.ne.s32.totalorder %s44, %s47
      %p56 = scmp.eq.s32.totalorder %s25, 8
      %p57 = por %p55, %p56
      %p58 = scmp.ne.s32.totalorder %s47, %s48
      %p59 = scmp.eq.s32.totalorder %s25, 0
      %p60 = por %p58, %p59
      %p61 = scmp.ne.s32.totalorder %s47, %s48
      %p62 = scmp.eq.s32.totalorder %s26, 8
      %p63 = por %p61, %p62
      %p65 = scmp.ne.s32.totalorder %s48, %s64
      %p66 = scmp.eq.s32.totalorder %s26, 0
      %p67 = por %p65, %p66
      %s68 = ssub.s32 %s28, %s35
      %p69 = scmp.eq.s32.totalorder %s68, 0
      %s71 = sadd.s32 %s70, 1
      %s72 = scalar_select %p69, %s70, %s71
      %p75 = pneg %p69
      %p76 = scmp.eq.s32.totalorder %s20, 8
      %p77 = por %p75, %p76
      %p78 = scmp.ne.s32.totalorder %s70, %s73
      %p79 = scmp.eq.s32.totalorder %s20, 0
      %p80 = por %p78, %p79
      %p81 = scmp.ne.s32.totalorder %s70, %s73
      %p82 = scmp.eq.s32.totalorder %s25, 8
      %p83 = por %p81, %p82
      %p84 = scmp.ne.s32.totalorder %s73, %s74
      %p85 = scmp.eq.s32.totalorder %s25, 0
      %p86 = por %p84, %p85
      %p87 = scmp.ne.s32.totalorder %s73, %s74
      %p88 = scmp.eq.s32.totalorder %s26, 8
      %p89 = por %p87, %p88
      %p91 = scmp.ne.s32.totalorder %s74, %s90
      %p92 = scmp.eq.s32.totalorder %s26, 0
      %p93 = por %p91, %p92
      %s95 = sadd.s32 %s94, 1
      %p98 = scmp.eq.s32.totalorder %s20, 8
      %p99 = scmp.ne.s32.totalorder %s94, %s96
      %p100 = scmp.eq.s32.totalorder %s20, 0
      %p101 = por %p99, %p100
      %p102 = scmp.ne.s32.totalorder %s94, %s96
      %p103 = scmp.eq.s32.totalorder %s25, 8
      %p104 = por %p102, %p103
      %p105 = scmp.ne.s32.totalorder %s96, %s97
      %p106 = scmp.eq.s32.totalorder %s25, 0
      %p107 = por %p105, %p106
      %p108 = scmp.ne.s32.totalorder %s96, %s97
      %p109 = scmp.eq.s32.totalorder %s26, 8
      %p110 = por %p108, %p109
      %p112 = scmp.ne.s32.totalorder %s97, %s111
      %p113 = scmp.eq.s32.totalorder %s26, 0
      %p114 = por %p112, %p113
      %s116 = sadd.s32 %s115, 1
      %p119 = scmp.eq.s32.totalorder %s20, 8
      %p120 = scmp.ne.s32.totalorder %s115, %s117
      %p121 = scmp.eq.s32.totalorder %s20, 0
      %p122 = por %p120, %p121
      %p123 = scmp.ne.s32.totalorder %s115, %s117
      %p124 = scmp.eq.s32.totalorder %s25, 8
      %p125 = por %p123, %p124
      %p126 = scmp.ne.s32.totalorder %s117, %s118
      %p127 = scmp.eq.s32.totalorder %s25, 0
      %p128 = por %p126, %p127
      %p129 = scmp.ne.s32.totalorder %s117, %s118
      %p130 = scmp.eq.s32.totalorder %s26, 8
      %p131 = por %p129, %p130
      %p133 = scmp.ne.s32.totalorder %s118, %s132
      %p134 = scmp.eq.s32.totalorder %s26, 0
      %p135 = por %p133, %p134
      %s137 = sadd.s32 %s136, 1
      %p140 = scmp.eq.s32.totalorder %s20, 8
      %p141 = scmp.ne.s32.totalorder %s136, %s138
      %p142 = scmp.eq.s32.totalorder %s20, 0
      %p143 = por %p141, %p142
      %p144 = scmp.ne.s32.totalorder %s136, %s138
      %p145 = scmp.eq.s32.totalorder %s25, 8
      %p146 = por %p144, %p145
      %p147 = scmp.ne.s32.totalorder %s138, %s139
      %p148 = scmp.eq.s32.totalorder %s25, 0
      %p149 = por %p147, %p148
      %p150 = scmp.ne.s32.totalorder %s138, %s139
      %p151 = scmp.eq.s32.totalorder %s26, 8
      %p152 = por %p150, %p151
      %p154 = scmp.ne.s32.totalorder %s139, %s153
      %p155 = scmp.eq.s32.totalorder %s26, 0
      %p156 = por %p154, %p155
      %s157 = ssub.s32 %s27, %s39
      %p158 = scmp.eq.s32.totalorder %s157, 0
      %s160 = sadd.s32 %s159, 1
      %s161 = scalar_select %p158, %s159, %s160
      %p164 = pneg %p158
      %p165 = scmp.eq.s32.totalorder %s20, 8
      %p166 = por %p164, %p165
      %p167 = scmp.ne.s32.totalorder %s159, %s162
      %p168 = scmp.eq.s32.totalorder %s20, 0
      %p169 = por %p167, %p168
      %p170 = scmp.ne.s32.totalorder %s159, %s162
      %p171 = scmp.eq.s32.totalorder %s25, 8
      %p172 = por %p170, %p171
      %p173 = scmp.ne.s32.totalorder %s162, %s163
      %p174 = scmp.eq.s32.totalorder %s25, 0
      %p175 = por %p173, %p174
      %p176 = scmp.ne.s32.totalorder %s162, %s163
      %p177 = scmp.eq.s32.totalorder %s26, 8
      %p178 = por %p176, %p177
      %p180 = scmp.ne.s32.totalorder %s163, %s179
      %p181 = scmp.eq.s32.totalorder %s26, 0
      %p182 = por %p180, %p181
      %p183 = scmp.le.s32.totalorder 1, %s20
      %p184 = scmp.lt.s32.totalorder %s20, 10
      %p185 = pnand %p183, %p184
      %p186 = pneg %p185
      // Predicated region
      $region9: #{tpu_custom_call.1} parent=5 // pred_check
        _
      $region10: #{tpu_custom_call.1} parent=5 // pred_check_branch
        %188 = sbr.rel (%p185) target = $region12
      $region11: #{tpu_custom_call.1} parent=5 // pred_region
        %s189 = ssub.s32 %s20, 1
        // Predicated region
        $region13: #{tpu_custom_call.1} parent=11 // pred_check
          %p190 = pneg %p107
        $region14: #{tpu_custom_call.1} parent=11 // pred_check_branch
          %192 = sbr.rel (%p190) target = $region16
        $region15: #{tpu_custom_call.1} parent=11 // pred_region
          _
        $region16: #{tpu_custom_call.1} parent=11 // pred_fallthru
          _
        // Predicated region
        $region17: #{tpu_custom_call.1} parent=11 // pred_check
          %p193 = pneg %p128
        $region18: #{tpu_custom_call.1} parent=11 // pred_check_branch
          %195 = sbr.rel (%p193) target = $region20
        $region19: #{tpu_custom_call.1} parent=11 // pred_region
          %s197 = ssub.s32 2048, 2048
          %198 = vsyncadd [#allocation7], %s197
          %s199 = sshll.u32 [#allocation8], 4
          %s200 = int_to_ptr.vmem [resolvable:$true] %s199
          %205 = dma.hbm_to_vmem [thread:$0]  %s3, 2048, %s200, [#allocation7], 128, 128, 8
        $region20: #{tpu_custom_call.1} parent=11 // pred_fallthru
          _
        // Predicated region
        $region21: #{tpu_custom_call.1} parent=11 // pred_check
          %p206 = pneg %p149
        $region22: #{tpu_custom_call.1} parent=11 // pred_check_branch
          %208 = sbr.rel (%p206) target = $region24
        $region23: #{tpu_custom_call.1} parent=11 // pred_region
          _
        $region24: #{tpu_custom_call.1} parent=11 // pred_fallthru
          _
      $region12: #{tpu_custom_call.1} parent=5 // pred_fallthru
        _
      %p209 = scmp.lt.s32.totalorder %s20, 9
      // Predicated region
      $region25: #{tpu_custom_call.1} parent=5 // pred_check
        %p210 = pneg %p209
      $region26: #{tpu_custom_call.1} parent=5 // pred_check_branch
        %212 = sbr.rel (%p210) target = $region28
      $region27: #{tpu_custom_call.1} parent=5 // pred_region
        // Predicated region
        $region29: #{tpu_custom_call.1} parent=27 // pred_check
          %p213 = pneg %p54
        $region30: #{tpu_custom_call.1} parent=27 // pred_check_branch
          %215 = sbr.rel (%p213) target = $region32
        $region31: #{tpu_custom_call.1} parent=27 // pred_region
          %s216 = sand.u32 %s44, 1
          %s217 = scalar_lea.sflag [#allocation4], %s216
          %s218 = sand.u32 %s44, 1
          %s219 = smul.addr %s218, 16
          %s220 = scalar_lea.vmem [#allocation3], %s219
          %s221 = smul.u32 2, %s27
          %s223 = ssub.s32 256, 256
          %224 = vsyncadd %s217, %s223
          %s225 = smul.addr %s221, 3
          %s226 = sadd.s32 %s28, %s225
          %s227 = smul.addr %s226, 128
          %s228 = scalar_lea.hbm %s0, %s227
          %s229 = sshll.u32 %s220, 4
          %s230 = int_to_ptr.vmem [resolvable:$true] %s229
          %235 = dma.hbm_to_vmem [thread:$0]  %s228, 256, %s230, %s217, 384, 128, 8
        $region32: #{tpu_custom_call.1} parent=27 // pred_fallthru
          _
        // Predicated region
        $region33: #{tpu_custom_call.1} parent=27 // pred_check
          %p236 = pneg %p80
        $region34: #{tpu_custom_call.1} parent=27 // pred_check_branch
          %238 = sbr.rel (%p236) target = $region36
        $region35: #{tpu_custom_call.1} parent=27 // pred_region
          %s239 = sand.u32 %s20, 1
          %s240 = scalar_lea.sflag [#allocation7], %s239
          %s241 = sand.u32 %s70, 1
          %s242 = smul.addr %s241, 128
          %s243 = scalar_lea.vmem [#allocation6], %s242
          %s244 = smul.u32 16, %s28
          %s246 = ssub.s32 2048, 2048
          %247 = vsyncadd %s240, %s246
          %s248 = smul.addr %s244, 128
          %s249 = scalar_lea.hbm %s1, %s248
          %s250 = sshll.u32 %s243, 4
          %s251 = int_to_ptr.vmem [resolvable:$true] %s250
          %256 = dma.hbm_to_vmem [thread:$0]  %s249, 2048, %s251, %s240, 128, 128, 8
        $region36: #{tpu_custom_call.1} parent=27 // pred_fallthru
          _
      $region28: #{tpu_custom_call.1} parent=5 // pred_fallthru
        _
      %p257 = scmp.le.s32.totalorder 1, %s20
      %p258 = scmp.lt.s32.totalorder %s20, 10
      %p259 = pnand %p257, %p258
      %p260 = pneg %p259
      // Predicated region
      $region37: #{tpu_custom_call.1} parent=5 // pred_check
        _
      $region38: #{tpu_custom_call.1} parent=5 // pred_check_branch
        %262 = sbr.rel (%p259) target = $region40
      $region39: #{tpu_custom_call.1} parent=5 // pred_region
        %s263 = ssub.s32 %s20, 1
        %s264 = sand.u32 %s47, 1
        %s265 = scalar_lea.sflag [#allocation4], %s264
        %s266 = sand.u32 %s47, 1
        %s267 = smul.addr %s266, 16
        %s268 = scalar_lea.vmem [#allocation3], %s267
        // Predicated region
        $region41: #{tpu_custom_call.1} parent=39 // pred_check
          %p269 = pneg %p60
        $region42: #{tpu_custom_call.1} parent=39 // pred_check_branch
          %271 = sbr.rel (%p269) target = $region44
        $region43: #{tpu_custom_call.1} parent=39 // pred_region
          %272 = dma.done %s265, 256
        $region44: #{tpu_custom_call.1} parent=39 // pred_fallthru
          _
        %s273 = sand.u32 %s25, 1
        %s274 = scalar_lea.sflag [#allocation7], %s273
        %s275 = sand.u32 %s73, 1
        %s276 = smul.addr %s275, 128
        %s277 = scalar_lea.vmem [#allocation6], %s276
        // Predicated region
        $region45: #{tpu_custom_call.1} parent=39 // pred_check
          %p278 = pneg %p86
        $region46: #{tpu_custom_call.1} parent=39 // pred_check_branch
          %280 = sbr.rel (%p278) target = $region48
        $region47: #{tpu_custom_call.1} parent=39 // pred_region
          %281 = dma.done %s274, 2048
        $region48: #{tpu_custom_call.1} parent=39 // pred_fallthru
          _
        // Predicated region
        $region49: #{tpu_custom_call.1} parent=39 // pred_check
          %p282 = pneg %p128
        $region50: #{tpu_custom_call.1} parent=39 // pred_check_branch
          %284 = sbr.rel (%p282) target = $region52
        $region51: #{tpu_custom_call.1} parent=39 // pred_region
          %285 = dma.done [#allocation7], 2048
        $region52: #{tpu_custom_call.1} parent=39 // pred_fallthru
          _
        %s286 = sand.u32 %s47, 1
        %s287 = scalar_lea.sflag [#allocation4], %s286
        %s288 = sand.u32 %s47, 1
        %s289 = smul.addr %s288, 16
        %s290 = scalar_lea.vmem [#allocation3], %s289
        %p291 = pneg %p60
        %p292 = pneg %p57
        %s293 = sand.u32 %s25, 1
        %s294 = scalar_lea.sflag [#allocation7], %s293
        %s295 = sand.u32 %s73, 1
        %s296 = smul.addr %s295, 128
        %s297 = scalar_lea.vmem [#allocation6], %s296
        %p298 = pneg %p86
        %p299 = pneg %p83
        %p300 = pneg %p107
        %p301 = pneg %p104
        %p302 = pneg %p128
        %p303 = pneg %p125
        %p304 = pneg %p149
        %p305 = pneg %p146
        %p306 = pneg %p175
        %p307 = pneg %p172
        %s308 = sand.u32 %s162, 1
        %s309 = scalar_lea.sflag [#allocation5], %s308
        %s310 = sand.u32 %s162, 1
        %s311 = smul.addr %s310, 16
        %s312 = scalar_lea.vmem [#allocation9], %s311
        %s313 = smul.u32 2, %s29
        %s314 = smul.u32 16, %s30
        %s315 = smul.u32 2, %s29
        %p316 = scmp.eq.s32.totalorder %s30, 0
        // Predicated region
        $region53: #{tpu_custom_call.1} parent=39 // pred_check
          %p317 = pneg %p316
        $region54: #{tpu_custom_call.1} parent=39 // pred_check_branch
          %319 = sbr.rel (%p317) target = $region56
        $region55: #{tpu_custom_call.1} parent=39 // pred_region
          %320 = vst [vmem:[#allocation2] sm:$0xff] 0.0
          %321 = vst [vmem:[#allocation2 + $0x8] sm:$0xff] 0.0
        $region56: #{tpu_custom_call.1} parent=39 // pred_fallthru
          _
        %v322 = vld [vmem:[%s277] sm:$0xff]
        %v323 = vld [vmem:[%s277 + $0x8] sm:$0xff]
        %v324 = vld [vmem:[%s277 + $0x10] sm:$0xff]
        %v325 = vld [vmem:[%s277 + $0x18] sm:$0xff]
        %v326 = vld [vmem:[%s277 + $0x20] sm:$0xff]
        %v327 = vld [vmem:[%s277 + $0x28] sm:$0xff]
        %v328 = vld [vmem:[%s277 + $0x30] sm:$0xff]
        %v329 = vld [vmem:[%s277 + $0x38] sm:$0xff]
        %v330 = vld [vmem:[%s277 + $0x40] sm:$0xff]
        %v331 = vld [vmem:[%s277 + $0x48] sm:$0xff]
        %v332 = vld [vmem:[%s277 + $0x50] sm:$0xff]
        %v333 = vld [vmem:[%s277 + $0x58] sm:$0xff]
        %v334 = vld [vmem:[%s277 + $0x60] sm:$0xff]
        %v335 = vld [vmem:[%s277 + $0x68] sm:$0xff]
        %v336 = vld [vmem:[%s277 + $0x70] sm:$0xff]
        %v337 = vld [vmem:[%s277 + $0x78] sm:$0xff]
        %v338 = vld [vmem:[#allocation2] sm:$0xff]
        %v339 = vld [vmem:[#allocation2 + $0x8] sm:$0xff]
        %v340 = vld [vmem:[%s268] sm:$0xff]
        %v341 = vld [vmem:[%s268 + $0x8] sm:$0xff]
        %342 = vmatprep.subr.mxu0 0.0
        %343 = vmatpush1.msra.mxu0 %v322
        %344 = vmatprep.subr.mxu0 0.0
        %345 = vmatpush1.msra.mxu0 %v323
        %346 = vmatprep.subr.mxu0 0.0
        %347 = vmatpush1.msra.mxu0 %v324
        %348 = vmatprep.subr.mxu0 0.0
        %349 = vmatpush1.msra.mxu0 %v325
        %350 = vmatprep.subr.mxu0 0.0
        %351 = vmatpush1.msra.mxu0 %v326
        %352 = vmatprep.subr.mxu0 0.0
        %353 = vmatpush1.msra.mxu0 %v327
        %354 = vmatprep.subr.mxu0 0.0
        %355 = vmatpush1.msra.mxu0 %v328
        %356 = vmatprep.subr.mxu0 0.0
        %357 = vmatpush1.msra.mxu0 %v329
        %358 = vmatprep.subr.mxu0 0.0
        %359 = vmatpush1.msra.mxu0 %v330
        %360 = vmatprep.subr.mxu0 0.0
        %361 = vmatpush1.msra.mxu0 %v331
        %362 = vmatprep.subr.mxu0 0.0
        %363 = vmatpush1.msra.mxu0 %v332
        %364 = vmatprep.subr.mxu0 0.0
        %365 = vmatpush1.msra.mxu0 %v333
        %366 = vmatprep.subr.mxu0 0.0
        %367 = vmatpush1.msra.mxu0 %v334
        %368 = vmatprep.subr.mxu0 0.0
        %369 = vmatpush1.msra.mxu0 %v335
        %370 = vmatprep.subr.mxu0 0.0
        %371 = vmatpush1.msra.mxu0 %v336
        %372 = vmatprep.subr.mxu0 0.0
        %373 = vmatpush1.msra.mxu0 %v337
        %374 = vmatprep.subr.mxu0 0.0
        %375 = vmatpush1.msra.mxu0 0.0
        %376 = vmatprep.subr.mxu0 0.0
        %377 = vmatpush1.msra.mxu0 0.0
        %378 = vmatprep.subr.mxu0 0.0
        %379 = vmatpush1.msra.mxu0 0.0
        %380 = vmatprep.subr.mxu0 0.0
        %381 = vmatpush1.msra.mxu0 0.0
        %382 = vmatprep.subr.mxu0 0.0
        %383 = vmatpush1.msra.mxu0 0.0
        %384 = vmatprep.subr.mxu0 0.0
        %385 = vmatpush1.msra.mxu0 0.0
        %386 = vmatprep.subr.mxu0 0.0
        %387 = vmatpush1.msra.mxu0 0.0
        %388 = vmatprep.subr.mxu0 0.0
        %389 = vmatpush1.msra.mxu0 0.0
        %390 = vmatprep.subr.mxu0 0.0
        %391 = vmatpush1.msra.mxu0 0.0
        %392 = vmatprep.subr.mxu0 0.0
        %393 = vmatpush1.msra.mxu0 0.0
        %394 = vmatprep.subr.mxu0 0.0
        %395 = vmatpush1.msra.mxu0 0.0
        %396 = vmatprep.subr.mxu0 0.0
        %397 = vmatpush1.msra.mxu0 0.0
        %398 = vmatprep.subr.mxu0 0.0
        %399 = vmatpush1.msra.mxu0 0.0
        %400 = vmatprep.subr.mxu0 0.0
        %401 = vmatpush1.msra.mxu0 0.0
        %402 = vmatprep.subr.mxu0 0.0
        %403 = vmatpush1.msra.mxu0 0.0
        %404 = vmatprep.subr.mxu0 0.0
        %405 = vmatpush1.msra.mxu0 0.0
        %406 = vmatprep.mubr.f32.mxu0 0.0
        %407 = vmatmul.mubr.f32.gmra.mrb[0].mxu0 %v340
        %v408 = vpop.f32.mrb[0].mxu0
        %v409 = vadd.f32 0.0, %v408
        %v410 = vpop.f32.mrb[0].mxu0
        %411 = vmatprep.mubr.f32.mxu0 0.0
        %412 = vmatmul.mubr.f32.gmra.mrb[0].mxu0 %v341
        %v413 = vpop.f32.mrb[0].mxu0
        %v414 = vadd.f32 0.0, %v413
        %v415 = vpop.f32.mrb[0].mxu0
        %416 = vdwg.mxu0
        %v417 = vadd.f32 %v338, %v409
        %v418 = vadd.f32 %v339, %v414
        %419 = vst [vmem:[#allocation2] sm:$0xff] %v417
        %420 = vst [vmem:[#allocation2 + $0x8] sm:$0xff] %v418
        %p421 = scmp.eq.s32.totalorder %s30, 2
        // Predicated region
        $region57: #{tpu_custom_call.1} parent=39 // pred_check
          %p422 = pneg %p421
        $region58: #{tpu_custom_call.1} parent=39 // pred_check_branch
          %424 = sbr.rel (%p422) target = $region60
        $region59: #{tpu_custom_call.1} parent=39 // pred_region
          %v425 = vld [vmem:[#allocation2] sm:$0xff]
          %v426 = vld [vmem:[#allocation2 + $0x8] sm:$0xff]
          %v427 = vld [vmem:[%s2] sm:$0x1]
          %v429 = vlaneseq
          %v430 = vshrl.u32 %v429, 7
          %v431 = vsub.s32 0, %v430
          %v432 = vrot.slane %v427, %v431
          %v434 = vadd.f32 %v425, %v432
          %v435 = vadd.f32 %v426, %v432
          %v436 = vmax.f32 %v434, 0.0
          %v437 = vmax.f32 %v435, 0.0
          %v438 = vld [vmem:[#allocation8] sm:$0xff]
          %v439 = vld [vmem:[#allocation8 + $0x8] sm:$0xff]
          %v440 = vld [vmem:[#allocation8 + $0x10] sm:$0xff]
          %v441 = vld [vmem:[#allocation8 + $0x18] sm:$0xff]
          %v442 = vld [vmem:[#allocation8 + $0x20] sm:$0xff]
          %v443 = vld [vmem:[#allocation8 + $0x28] sm:$0xff]
          %v444 = vld [vmem:[#allocation8 + $0x30] sm:$0xff]
          %v445 = vld [vmem:[#allocation8 + $0x38] sm:$0xff]
          %v446 = vld [vmem:[#allocation8 + $0x40] sm:$0xff]
          %v447 = vld [vmem:[#allocation8 + $0x48] sm:$0xff]
          %v448 = vld [vmem:[#allocation8 + $0x50] sm:$0xff]
          %v449 = vld [vmem:[#allocation8 + $0x58] sm:$0xff]
          %v450 = vld [vmem:[#allocation8 + $0x60] sm:$0xff]
          %v451 = vld [vmem:[#allocation8 + $0x68] sm:$0xff]
          %v452 = vld [vmem:[#allocation8 + $0x70] sm:$0xff]
          %v453 = vld [vmem:[#allocation8 + $0x78] sm:$0xff]
          %v454 = vld [vmem:[%s4] sm:$0x1]
          %v456 = vlaneseq
          %v457 = vshrl.u32 %v456, 7
          %v458 = vsub.s32 0, %v457
          %v459 = vrot.slane %v454, %v458
          %461 = vmatprep.subr.mxu0 0.0
          %462 = vmatpush1.msra.mxu0 %v438
          %463 = vmatprep.subr.mxu0 0.0
          %464 = vmatpush1.msra.mxu0 %v439
          %465 = vmatprep.subr.mxu0 0.0
          %466 = vmatpush1.msra.mxu0 %v440
          %467 = vmatprep.subr.mxu0 0.0
          %468 = vmatpush1.msra.mxu0 %v441
          %469 = vmatprep.subr.mxu0 0.0
          %470 = vmatpush1.msra.mxu0 %v442
          %471 = vmatprep.subr.mxu0 0.0
          %472 = vmatpush1.msra.mxu0 %v443
          %473 = vmatprep.subr.mxu0 0.0
          %474 = vmatpush1.msra.mxu0 %v444
          %475 = vmatprep.subr.mxu0 0.0
          %476 = vmatpush1.msra.mxu0 %v445
          %477 = vmatprep.subr.mxu0 0.0
          %478 = vmatpush1.msra.mxu0 %v446
          %479 = vmatprep.subr.mxu0 0.0
          %480 = vmatpush1.msra.mxu0 %v447
          %481 = vmatprep.subr.mxu0 0.0
          %482 = vmatpush1.msra.mxu0 %v448
          %483 = vmatprep.subr.mxu0 0.0
          %484 = vmatpush1.msra.mxu0 %v449
          %485 = vmatprep.subr.mxu0 0.0
          %486 = vmatpush1.msra.mxu0 %v450
          %487 = vmatprep.subr.mxu0 0.0
          %488 = vmatpush1.msra.mxu0 %v451
          %489 = vmatprep.subr.mxu0 0.0
          %490 = vmatpush1.msra.mxu0 %v452
          %491 = vmatprep.subr.mxu0 0.0
          %492 = vmatpush1.msra.mxu0 %v453
          %493 = vmatprep.subr.mxu0 0.0
          %494 = vmatpush1.msra.mxu0 0.0
          %495 = vmatprep.subr.mxu0 0.0
          %496 = vmatpush1.msra.mxu0 0.0
          %497 = vmatprep.subr.mxu0 0.0
          %498 = vmatpush1.msra.mxu0 0.0
          %499 = vmatprep.subr.mxu0 0.0
          %500 = vmatpush1.msra.mxu0 0.0
          %501 = vmatprep.subr.mxu0 0.0
          %502 = vmatpush1.msra.mxu0 0.0
          %503 = vmatprep.subr.mxu0 0.0
          %504 = vmatpush1.msra.mxu0 0.0
          %505 = vmatprep.subr.mxu0 0.0
          %506 = vmatpush1.msra.mxu0 0.0
          %507 = vmatprep.subr.mxu0 0.0
          %508 = vmatpush1.msra.mxu0 0.0
          %509 = vmatprep.subr.mxu0 0.0
          %510 = vmatpush1.msra.mxu0 0.0
          %511 = vmatprep.subr.mxu0 0.0
          %512 = vmatpush1.msra.mxu0 0.0
          %513 = vmatprep.subr.mxu0 0.0
          %514 = vmatpush1.msra.mxu0 0.0
          %515 = vmatprep.subr.mxu0 0.0
          %516 = vmatpush1.msra.mxu0 0.0
          %517 = vmatprep.subr.mxu0 0.0
          %518 = vmatpush1.msra.mxu0 0.0
          %519 = vmatprep.subr.mxu0 0.0
          %520 = vmatpush1.msra.mxu0 0.0
          %521 = vmatprep.subr.mxu0 0.0
          %522 = vmatpush1.msra.mxu0 0.0
          %523 = vmatprep.subr.mxu0 0.0
          %524 = vmatpush1.msra.mxu0 0.0
          %525 = vmatprep.mubr.f32.mxu0 0.0
          %526 = vmatmul.mubr.f32.gmra.mrb[0].mxu0 %v436
          %v527 = vpop.f32.mrb[0].mxu0
          %v528 = vadd.f32 %v459, %v527
          %v529 = vpop.f32.mrb[0].mxu0
          %530 = vmatprep.mubr.f32.mxu0 0.0
          %531 = vmatmul.mubr.f32.gmra.mrb[0].mxu0 %v437
          %v532 = vpop.f32.mrb[0].mxu0
          %v533 = vadd.f32 %v459, %v532
          %v534 = vpop.f32.mrb[0].mxu0
          %535 = vdwg.mxu0
          %536 = vst [vmem:[%s312] sm:$0xff] %v528
          %537 = vst [vmem:[%s312 + $0x8] sm:$0xff] %v533
        $region60: #{tpu_custom_call.1} parent=39 // pred_fallthru
          _
        %s538 = sand.u32 %s162, 1
        %s539 = scalar_lea.sflag [#allocation5], %s538
        %s540 = sand.u32 %s162, 1
        %s541 = smul.addr %s540, 16
        %s542 = scalar_lea.vmem [#allocation9], %s541
        // Predicated region
        $region61: #{tpu_custom_call.1} parent=39 // pred_check
          %p543 = pneg %p172
        $region62: #{tpu_custom_call.1} parent=39 // pred_check_branch
          %545 = sbr.rel (%p543) target = $region64
        $region63: #{tpu_custom_call.1} parent=39 // pred_region
          %s546 = smul.u32 2, %s29
          %s548 = ssub.s32 256, 256
          %549 = vsyncadd %s539, %s548
          %s550 = smul.addr %s546, 128
          %s551 = scalar_lea.hbm %s5, %s550
          %s552 = sshll.u32 %s542, 4
          %s553 = int_to_ptr.vmem [resolvable:$true] %s552
          %558 = dma.vmem_to_hbm [thread:$0]  %s553, 256, %s551, %s539, 128, 128, 8
        $region64: #{tpu_custom_call.1} parent=39 // pred_fallthru
          _
      $region40: #{tpu_custom_call.1} parent=5 // pred_fallthru
        _
      %p559 = scmp.le.s32.totalorder 2, %s20
      // Predicated region
      $region65: #{tpu_custom_call.1} parent=5 // pred_check
        %p560 = pneg %p559
      $region66: #{tpu_custom_call.1} parent=5 // pred_check_branch
        %562 = sbr.rel (%p560) target = $region68
      $region67: #{tpu_custom_call.1} parent=5 // pred_region
        %s563 = ssub.s32 %s20, 2
        // Predicated region
        $region69: #{tpu_custom_call.1} parent=67 // pred_check
          %p564 = pneg %p178
        $region70: #{tpu_custom_call.1} parent=67 // pred_check_branch
          %566 = sbr.rel (%p564) target = $region72
        $region71: #{tpu_custom_call.1} parent=67 // pred_region
          %s567 = sand.u32 %s163, 1
          %s568 = scalar_lea.sflag [#allocation5], %s567
          %s569 = sand.u32 %s163, 1
          %s570 = smul.addr %s569, 16
          %s571 = scalar_lea.vmem [#allocation9], %s570
          %572 = dma.done %s568, 256
        $region72: #{tpu_custom_call.1} parent=67 // pred_fallthru
          _
      $region68: #{tpu_custom_call.1} parent=5 // pred_fallthru
        _
    $region6: #{tpu_custom_call.1} parent=1 // loop_footer
      %s24 = sadd.s32 1, %s20
    $region7: #{tpu_custom_call.1} parent=1 // loop_footer_branch
      %19 = sbr.rel target = $region3
    $region8: #{tpu_custom_call.1} parent=1 // loop_exit
      _
    %573 = vsyncpa [#allocation4], 1
    %s574 = scalar_lea.sflag [#allocation4], 1
    %575 = vsyncpa %s574, 1
    %576 = vsyncpa [#allocation7], 1
    %s577 = scalar_lea.sflag [#allocation7], 1
    %578 = vsyncpa %s577, 1
    %579 = vsyncpa [#allocation5], 1
    %s580 = scalar_lea.sflag [#allocation5], 1
    %581 = vsyncpa %s580, 1

</llo_original>
